<compile_context>
chip_gen: v7x
topology: tpu7x:2x2x1
jax: 0.10.0
libtpu: 0.0.40
codegen_flags: <defaults>
</compile_context>

<pallas_src>
import functools

import jax
import jax.numpy as jnp
from jax import lax
from jax.experimental import pallas as pl
from jax.experimental.pallas import tpu as pltpu


# ---------------------------------------------------------------------------
# Pallas kernel: one batch element per grid step.
# ---------------------------------------------------------------------------
def _cross_modal_attn_kernel(a_ref, b_ref, wq_ref, wk_ref, wg_ref,
                             wp_ref, wf_ref, bias_ref, o_ref, *, scale):
    a = a_ref[0].astype(jnp.float32)        # (N, Da)
    bm = b_ref[0].astype(jnp.float32)       # (N, Db)

    # PyTorch F.normalize clamps the L2 norm at eps=1e-12; use eps^2 on the
    # squared sum so we can stay on the rsqrt (EUP) path.
    eps_sq = jnp.float32(1e-24)

    # ---- to_query / to_key (Linear) ----------------------------------------
    query = jnp.dot(a, wq_ref[...], preferred_element_type=jnp.float32)
    query = query + bias_ref[0:1, :]                                 # (N, D)
    key = jnp.dot(bm, wk_ref[...], preferred_element_type=jnp.float32)
    key = key + bias_ref[1:2, :]                                     # (N, D)

    # ---- L2 normalize over the feature (lane) axis --------------------------
    q_inv = lax.rsqrt(jnp.maximum(
        jnp.sum(query * query, axis=-1, keepdims=True), eps_sq))
    query = query * q_inv
    k_inv = lax.rsqrt(jnp.maximum(
        jnp.sum(key * key, axis=-1, keepdims=True), eps_sq))
    key = key * k_inv

    # ---- attention weights: query @ w_g as lane reduce (w_g is (1, D)) ------
    qw = jnp.sum(query * wg_ref[...], axis=-1, keepdims=True)        # (N, 1)
    # scale_factor cancels under the dim=1 normalization (except at the eps
    # clamp); kept for exact parity with the PyTorch forward -- it is N flops.
    A = qw * jnp.float32(scale)
    a_inv = lax.rsqrt(jnp.maximum(
        jnp.sum(A * A, axis=0, keepdims=True), eps_sq))              # (1, 1)
    A = A * a_inv

    # ---- global query descriptor G (broadcast replaces einops.repeat) -------
    G = jnp.sum(A * query, axis=0, keepdims=True)                    # (1, D)

    # ---- Proj(G * key) + query ----------------------------------------------
    gk = G * key                                                     # (N, D)
    proj = jnp.dot(gk, wp_ref[...], preferred_element_type=jnp.float32)
    out = proj + bias_ref[2:3, :] + query

    # ---- final Linear --------------------------------------------------------
    out = jnp.dot(out, wf_ref[...], preferred_element_type=jnp.float32)
    out = out + bias_ref[3:4, :]

    o_ref[0] = out.astype(o_ref.dtype)


# ---------------------------------------------------------------------------
# Wrapper: parameter packing, BlockSpecs, VMEM budgeting.
# ---------------------------------------------------------------------------
def cross_modal_attention_forward(a, b, params):
    B, N, Da = a.shape
    Bb, Nb, Db = b.shape
    assert B == Bb and N == Nb, "residual '+ query' requires matching (B, N)"
    D = params["wq"].shape[1]                     # == in_a_dims
    scale = float(D) ** (-0.5)

    # Pack the four bias vectors into one lane-dense (4, D) array.
    biases = jnp.stack(
        [params["bq"], params["bk"], params["bp"], params["bf"]], axis=0)
    # w_g: PyTorch layout (D, 1) -> lane-dense row (1, D).
    wg_row = params["w_g"].reshape(1, D)

    # Explicit scoped-VMEM budget from the real footprint (double-buffered
    # I/O blocks + resident weights + f32 intermediates), clamped to what
    # every TPU generation can grant.
    f32 = 4
    io_blocks = (N * Da + N * Db + N * D) * f32
    weights = (Da * D + Db * D + D + 2 * D * D + 4 * D) * f32
    interm = 8 * N * D * f32
    vmem_limit = int(min(64 * 1024 * 1024,
                         max(32 * 1024 * 1024,
                             2 * io_blocks + weights + interm)))
    # TODO(synk): for very long sequences (N*D f32 blocks > ~16 MiB) add a
    # sequence-tiled two-pass variant (pass 1: A-norm + G, pass 2: output).

    kernel = functools.partial(_cross_modal_attn_kernel, scale=scale)

    out = pl.pallas_call(
        kernel,
        out_shape=jax.ShapeDtypeStruct((B, N, D), a.dtype),
        grid_spec=pltpu.PrefetchScalarGridSpec(
            num_scalar_prefetch=0,
            grid=(B,),
            in_specs=[
                pl.BlockSpec((1, N, Da), lambda i: (i, 0, 0)),   # a
                pl.BlockSpec((1, N, Db), lambda i: (i, 0, 0)),   # b
                pl.BlockSpec((Da, D), lambda i: (0, 0)),         # Wq
                pl.BlockSpec((Db, D), lambda i: (0, 0)),         # Wk
                pl.BlockSpec((1, D), lambda i: (0, 0)),          # w_g row
                pl.BlockSpec((D, D), lambda i: (0, 0)),          # Wproj
                pl.BlockSpec((D, D), lambda i: (0, 0)),          # Wfinal
                pl.BlockSpec((4, D), lambda i: (0, 0)),          # packed biases
            ],
            out_specs=pl.BlockSpec((1, N, D), lambda i: (i, 0, 0)),
        ),
        compiler_params=pltpu.CompilerParams(
            dimension_semantics=("parallel",),
            vmem_limit_bytes=vmem_limit),
    )(a, b, params["wq"], params["wk"], wg_row,
      params["wp"], params["wf"], biases)
    return out


# ---------------------------------------------------------------------------
# Deterministic parameter init (PyTorch Linear-style init, pre-transposed
# to (in, out) so the kernel does plain x @ W).
# ---------------------------------------------------------------------------
def init_params(key, in_a_dims, in_b_dims):
    ks = jax.random.split(key, 9)
    D = in_a_dims

    def lin_w(k, fan_in, fan_out):
        bound = 1.0 / (fan_in ** 0.5)
        return jax.random.uniform(k, (fan_in, fan_out), jnp.float32,
                                  -bound, bound)

    def lin_b(k, fan_in, fan_out):
        bound = 1.0 / (fan_in ** 0.5)
        return jax.random.uniform(k, (fan_out,), jnp.float32, -bound, bound)

    return {
        "wq": lin_w(ks[0], in_a_dims, D), "bq": lin_b(ks[1], in_a_dims, D),
        "wk": lin_w(ks[2], in_b_dims, D), "bk": lin_b(ks[3], in_b_dims, D),
        "w_g": jax.random.normal(ks[4], (D, 1), jnp.float32),
        "wp": lin_w(ks[5], D, D), "bp": lin_b(ks[6], D, D),
        "wf": lin_w(ks[7], D, D), "bf": lin_b(ks[8], D, D),
    }


# ---------------------------------------------------------------------------
# Pure-JAX reference (mirrors the PyTorch forward) for verification.
# ---------------------------------------------------------------------------
def reference_forward(a, b, params):
    D = params["wq"].shape[1]
    scale = float(D) ** (-0.5)
    hp = lax.Precision.HIGHEST

    def l2norm(x, axis):
        n = jnp.sqrt(jnp.sum(x * x, axis=axis, keepdims=True))
        return x / jnp.maximum(n, 1e-12)

    query = jnp.einsum("bnd,de->bne", a, params["wq"], precision=hp)
    query = query + params["bq"]
    key = jnp.einsum("bnd,de->bne", b, params["wk"], precision=hp)
    key = key + params["bk"]
    query = l2norm(query, -1)
    key = l2norm(key, -1)

    qw = jnp.einsum("bnd,d->bn", query, params["w_g"][:, 0],
                    precision=hp)[..., None]              # (B, N, 1)
    A = l2norm(qw * scale, 1)                             # normalize over seq
    G = jnp.sum(A * query, axis=1, keepdims=True)         # (B, 1, D)

    proj = jnp.einsum("bnd,de->bne", G * key, params["wp"], precision=hp)
    out = proj + params["bp"] + query
    out = jnp.einsum("bnd,de->bne", out, params["wf"], precision=hp)
    return out + params["bf"]


if __name__ == "__main__":
    B, N = 2, 8
    in_a_dims, in_b_dims = 32, 64

    key = jax.random.PRNGKey(0)
    k_a, k_b, k_p = jax.random.split(key, 3)
    a = jax.random.normal(k_a, (B, N, in_a_dims), jnp.float32)
    b = jax.random.normal(k_b, (B, N, in_b_dims), jnp.float32)
    params = init_params(k_p, in_a_dims, in_b_dims)

    out = jax.block_until_ready(cross_modal_attention_forward(a, b, params))
    ref = jax.block_until_ready(reference_forward(a, b, params))

    assert out.shape == (B, N, in_a_dims)
    assert jnp.allclose(out, ref, atol=1e-4, rtol=1e-4), (
        float(jnp.max(jnp.abs(out - ref))))

    print("KERNEL_OK")
</pallas_src>

<mosaic_0001>
module attributes {stable_mosaic.version = 11 : i64} {
  func.func @_cross_modal_attn_kernel(%arg0: i32, %arg1: memref<1x8x32xf32, #tpu.memory_space<vmem>>, %arg2: memref<1x8x64xf32, #tpu.memory_space<vmem>>, %arg3: memref<32x32xf32, #tpu.memory_space<vmem>>, %arg4: memref<64x32xf32, #tpu.memory_space<vmem>>, %arg5: memref<1x32xf32, #tpu.memory_space<vmem>>, %arg6: memref<32x32xf32, #tpu.memory_space<vmem>>, %arg7: memref<32x32xf32, #tpu.memory_space<vmem>>, %arg8: memref<4x32xf32, #tpu.memory_space<vmem>>, %arg9: memref<1x8x32xf32, #tpu.memory_space<vmem>>) attributes {dimension_semantics = [#tpu.dimension_semantics<parallel>], iteration_bounds = array<i64: 2>, scalar_prefetch = 0 : i64, scratch_operands = 0 : i64, tpu.core_type = #tpu.core_type<tc>, window_params = [{transform_indices = @transform_0, window_bounds = array<i64: 1, 8, 32>}, {transform_indices = @transform_1, window_bounds = array<i64: 1, 8, 64>}, {pipeline_mode = #tpu.pipeline_mode<synchronous>, transform_indices = @transform_2, window_bounds = array<i64: 32, 32>}, {pipeline_mode = #tpu.pipeline_mode<synchronous>, transform_indices = @transform_3, window_bounds = array<i64: 64, 32>}, {pipeline_mode = #tpu.pipeline_mode<synchronous>, transform_indices = @transform_4, window_bounds = array<i64: 1, 32>}, {pipeline_mode = #tpu.pipeline_mode<synchronous>, transform_indices = @transform_5, window_bounds = array<i64: 32, 32>}, {pipeline_mode = #tpu.pipeline_mode<synchronous>, transform_indices = @transform_6, window_bounds = array<i64: 32, 32>}, {pipeline_mode = #tpu.pipeline_mode<synchronous>, transform_indices = @transform_7, window_bounds = array<i64: 4, 32>}, {transform_indices = @transform_8, window_bounds = array<i64: 1, 8, 32>}]} {
    %c0 = arith.constant 0 : index
    %c0_0 = arith.constant 0 : index
    %c0_1 = arith.constant 0 : index
    %0 = vector.load %arg1[%c0, %c0_0, %c0_1] : memref<1x8x32xf32, #tpu.memory_space<vmem>>, vector<1x8x32xf32>
    %1 = vector.shape_cast %0 : vector<1x8x32xf32> to vector<8x32xf32>
    %c0_2 = arith.constant 0 : index
    %c0_3 = arith.constant 0 : index
    %c0_4 = arith.constant 0 : index
    %2 = vector.load %arg2[%c0_2, %c0_3, %c0_4] : memref<1x8x64xf32, #tpu.memory_space<vmem>>, vector<1x8x64xf32>
    %3 = vector.shape_cast %2 : vector<1x8x64xf32> to vector<8x64xf32>
    %c0_5 = arith.constant 0 : index
    %c0_6 = arith.constant 0 : index
    %4 = vector.load %arg3[%c0_5, %c0_6] : memref<32x32xf32, #tpu.memory_space<vmem>>, vector<32x32xf32>
    %cst = arith.constant dense<0.000000e+00> : vector<8x32xf32>
    %5 = tpu.matmul %1, %4, %cst {dimension_numbers = #tpu.dot_dimension_numbers<[1], [0], [0], [1], [0, 0, 1, 1], [], []>} : vector<8x32xf32>, vector<32x32xf32>, vector<8x32xf32> -> vector<8x32xf32>
    %c0_7 = arith.constant 0 : index
    %c0_8 = arith.constant 0 : index
    %6 = vector.load %arg8[%c0_7, %c0_8] : memref<4x32xf32, #tpu.memory_space<vmem>>, vector<1x32xf32>
    %7 = vector.broadcast %6 : vector<1x32xf32> to vector<8x32xf32>
    %8 = arith.addf %5, %7 : vector<8x32xf32>
    %c0_9 = arith.constant 0 : index
    %c0_10 = arith.constant 0 : index
    %9 = vector.load %arg4[%c0_9, %c0_10] : memref<64x32xf32, #tpu.memory_space<vmem>>, vector<64x32xf32>
    %cst_11 = arith.constant dense<0.000000e+00> : vector<8x32xf32>
    %10 = tpu.matmul %3, %9, %cst_11 {dimension_numbers = #tpu.dot_dimension_numbers<[1], [0], [0], [1], [0, 0, 1, 1], [], []>} : vector<8x64xf32>, vector<64x32xf32>, vector<8x32xf32> -> vector<8x32xf32>
    %c1 = arith.constant 1 : index
    %c0_12 = arith.constant 0 : index
    %11 = vector.load %arg8[%c1, %c0_12] : memref<4x32xf32, #tpu.memory_space<vmem>>, vector<1x32xf32>
    %12 = vector.broadcast %11 : vector<1x32xf32> to vector<8x32xf32>
    %13 = arith.addf %10, %12 : vector<8x32xf32>
    %14 = arith.mulf %8, %8 : vector<8x32xf32>
    %cst_13 = arith.constant dense<0.000000e+00> : vector<8xf32>
    %15 = vector.multi_reduction <add>, %14, %cst_13 [1] : vector<8x32xf32> to vector<8xf32>
    %16 = vector.shape_cast %15 : vector<8xf32> to vector<8x1xf32>
    %cst_14 = arith.constant 1.000000e-24 : f32
    %17 = vector.broadcast %cst_14 : f32 to vector<8x1xf32>
    %18 = arith.maximumf %16, %17 : vector<8x1xf32>
    %19 = math.rsqrt %18 : vector<8x1xf32>
    %20 = vector.broadcast %19 : vector<8x1xf32> to vector<8x32xf32>
    %21 = arith.mulf %8, %20 : vector<8x32xf32>
    %22 = arith.mulf %13, %13 : vector<8x32xf32>
    %cst_15 = arith.constant dense<0.000000e+00> : vector<8xf32>
    %23 = vector.multi_reduction <add>, %22, %cst_15 [1] : vector<8x32xf32> to vector<8xf32>
    %24 = vector.shape_cast %23 : vector<8xf32> to vector<8x1xf32>
    %cst_16 = arith.constant 1.000000e-24 : f32
    %25 = vector.broadcast %cst_16 : f32 to vector<8x1xf32>
    %26 = arith.maximumf %24, %25 : vector<8x1xf32>
    %27 = math.rsqrt %26 : vector<8x1xf32>
    %28 = vector.broadcast %27 : vector<8x1xf32> to vector<8x32xf32>
    %29 = arith.mulf %13, %28 : vector<8x32xf32>
    %c0_17 = arith.constant 0 : index
    %c0_18 = arith.constant 0 : index
    %30 = vector.load %arg5[%c0_17, %c0_18] : memref<1x32xf32, #tpu.memory_space<vmem>>, vector<1x32xf32>
    %31 = vector.broadcast %30 : vector<1x32xf32> to vector<8x32xf32>
    %32 = arith.mulf %21, %31 : vector<8x32xf32>
    %cst_19 = arith.constant dense<0.000000e+00> : vector<8xf32>
    %33 = vector.multi_reduction <add>, %32, %cst_19 [1] : vector<8x32xf32> to vector<8xf32>
    %34 = vector.shape_cast %33 : vector<8xf32> to vector<8x1xf32>
    %cst_20 = arith.constant 0.176776692 : f32
    %35 = vector.broadcast %cst_20 : f32 to vector<8x1xf32>
    %36 = arith.mulf %34, %35 : vector<8x1xf32>
    %37 = arith.mulf %36, %36 : vector<8x1xf32>
    %cst_21 = arith.constant dense<0.000000e+00> : vector<1xf32>
    %38 = vector.multi_reduction <add>, %37, %cst_21 [0] : vector<8x1xf32> to vector<1xf32>
    %39 = vector.shape_cast %38 : vector<1xf32> to vector<1x1xf32>
    %cst_22 = arith.constant 1.000000e-24 : f32
    %40 = vector.broadcast %cst_22 : f32 to vector<1x1xf32>
    %41 = arith.maximumf %39, %40 : vector<1x1xf32>
    %42 = math.rsqrt %41 : vector<1x1xf32>
    %43 = vector.broadcast %42 : vector<1x1xf32> to vector<8x1xf32>
    %44 = arith.mulf %36, %43 : vector<8x1xf32>
    %45 = vector.broadcast %44 : vector<8x1xf32> to vector<8x32xf32>
    %46 = arith.mulf %45, %21 : vector<8x32xf32>
    %cst_23 = arith.constant dense<0.000000e+00> : vector<32xf32>
    %47 = vector.multi_reduction <add>, %46, %cst_23 [0] : vector<8x32xf32> to vector<32xf32>
    %48 = vector.shape_cast %47 : vector<32xf32> to vector<1x32xf32>
    %49 = vector.broadcast %48 : vector<1x32xf32> to vector<8x32xf32>
    %50 = arith.mulf %49, %29 : vector<8x32xf32>
    %c0_24 = arith.constant 0 : index
    %c0_25 = arith.constant 0 : index
    %51 = vector.load %arg6[%c0_24, %c0_25] : memref<32x32xf32, #tpu.memory_space<vmem>>, vector<32x32xf32>
    %cst_26 = arith.constant dense<0.000000e+00> : vector<8x32xf32>
    %52 = tpu.matmul %50, %51, %cst_26 {dimension_numbers = #tpu.dot_dimension_numbers<[1], [0], [0], [1], [0, 0, 1, 1], [], []>} : vector<8x32xf32>, vector<32x32xf32>, vector<8x32xf32> -> vector<8x32xf32>
    %c2 = arith.constant 2 : index
    %c0_27 = arith.constant 0 : index
    %53 = vector.load %arg8[%c2, %c0_27] : memref<4x32xf32, #tpu.memory_space<vmem>>, vector<1x32xf32>
    %54 = vector.broadcast %53 : vector<1x32xf32> to vector<8x32xf32>
    %55 = arith.addf %52, %54 : vector<8x32xf32>
    %56 = arith.addf %55, %21 : vector<8x32xf32>
    %c0_28 = arith.constant 0 : index
    %c0_29 = arith.constant 0 : index
    %57 = vector.load %arg7[%c0_28, %c0_29] : memref<32x32xf32, #tpu.memory_space<vmem>>, vector<32x32xf32>
    %cst_30 = arith.constant dense<0.000000e+00> : vector<8x32xf32>
    %58 = tpu.matmul %56, %57, %cst_30 {dimension_numbers = #tpu.dot_dimension_numbers<[1], [0], [0], [1], [0, 0, 1, 1], [], []>} : vector<8x32xf32>, vector<32x32xf32>, vector<8x32xf32> -> vector<8x32xf32>
    %c3 = arith.constant 3 : index
    %c0_31 = arith.constant 0 : index
    %59 = vector.load %arg8[%c3, %c0_31] : memref<4x32xf32, #tpu.memory_space<vmem>>, vector<1x32xf32>
    %60 = vector.broadcast %59 : vector<1x32xf32> to vector<8x32xf32>
    %61 = arith.addf %58, %60 : vector<8x32xf32>
    %c0_32 = arith.constant 0 : index
    %c0_33 = arith.constant 0 : index
    %c0_34 = arith.constant 0 : index
    %62 = vector.load %arg9[%c0_32, %c0_33, %c0_34] : memref<1x8x32xf32, #tpu.memory_space<vmem>>, vector<1x8x32xf32>
    %63 = vector.shape_cast %62 : vector<1x8x32xf32> to vector<8x32xf32>
    %64 = vector.shape_cast %61 : vector<8x32xf32> to vector<1x8x32xf32>
    tpu.vector_store %arg9[%c0_32, %c0_33, %c0_34], %64 {strides = array<i32>} : memref<1x8x32xf32, #tpu.memory_space<vmem>>, vector<1x8x32xf32>,
    return
  }
  func.func @transform_0(%arg0: i32) -> (i32, i32, i32) {
    %c0_i32 = arith.constant 0 : i32
    %c0_i32_0 = arith.constant 0 : i32
    %c0_i32_1 = arith.constant 0 : i32
    return %arg0, %c0_i32, %c0_i32_0 : i32, i32, i32
  }
  func.func @transform_1(%arg0: i32) -> (i32, i32, i32) {
    %c0_i32 = arith.constant 0 : i32
    %c0_i32_0 = arith.constant 0 : i32
    %c0_i32_1 = arith.constant 0 : i32
    return %arg0, %c0_i32, %c0_i32_0 : i32, i32, i32
  }
  func.func @transform_2(%arg0: i32) -> (i32, i32) {
    %c0_i32 = arith.constant 0 : i32
    %c0_i32_0 = arith.constant 0 : i32
    %c0_i32_1 = arith.constant 0 : i32
    return %c0_i32, %c0_i32_0 : i32, i32
  }
  func.func @transform_3(%arg0: i32) -> (i32, i32) {
    %c0_i32 = arith.constant 0 : i32
    %c0_i32_0 = arith.constant 0 : i32
    %c0_i32_1 = arith.constant 0 : i32
    return %c0_i32, %c0_i32_0 : i32, i32
  }
  func.func @transform_4(%arg0: i32) -> (i32, i32) {
    %c0_i32 = arith.constant 0 : i32
    %c0_i32_0 = arith.constant 0 : i32
    %c0_i32_1 = arith.constant 0 : i32
    return %c0_i32, %c0_i32_0 : i32, i32
  }
  func.func @transform_5(%arg0: i32) -> (i32, i32) {
    %c0_i32 = arith.constant 0 : i32
    %c0_i32_0 = arith.constant 0 : i32
    %c0_i32_1 = arith.constant 0 : i32
    return %c0_i32, %c0_i32_0 : i32, i32
  }
  func.func @transform_6(%arg0: i32) -> (i32, i32) {
    %c0_i32 = arith.constant 0 : i32
    %c0_i32_0 = arith.constant 0 : i32
    %c0_i32_1 = arith.constant 0 : i32
    return %c0_i32, %c0_i32_0 : i32, i32
  }
  func.func @transform_7(%arg0: i32) -> (i32, i32) {
    %c0_i32 = arith.constant 0 : i32
    %c0_i32_0 = arith.constant 0 : i32
    %c0_i32_1 = arith.constant 0 : i32
    return %c0_i32, %c0_i32_0 : i32, i32
  }
  func.func @transform_8(%arg0: i32) -> (i32, i32, i32) {
    %c0_i32 = arith.constant 0 : i32
    %c0_i32_0 = arith.constant 0 : i32
    %c0_i32_1 = arith.constant 0 : i32
    return %arg0, %c0_i32, %c0_i32_0 : i32, i32, i32
  }
}

</mosaic_0001>

<llo_original>
// kernel: tpu_custom_call.1
$region0: #{tpu_custom_call.1}
  #allocation0 [shape = 'u32[]', space=smem, size = 0x4, offset = 0x4, fixed_abs, tag = 'smem constant byte address 0x4 - core index']
  #allocation1 [shape = 'u32[144,128]{1,0:T(1,128)}', space=vmem, size = 0x12000, scoped, tag = 'internal scratch']
  %s0 = inlined_call_operand.hbm [shape: f32[2,8,32], index: 0, kind: input, shape index: {}]
  %s1 = inlined_call_operand.hbm [shape: f32[2,8,64], index: 1, kind: input, shape index: {}]
  %s2 = inlined_call_operand.vmem [shape: f32[32,32], index: 2, kind: input, shape index: {}]
  %s3 = inlined_call_operand.vmem [shape: f32[64,32], index: 3, kind: input, shape index: {}]
  %s4 = inlined_call_operand.vmem [shape: f32[1,32], index: 4, kind: input, shape index: {}]
  %s5 = inlined_call_operand.vmem [shape: f32[32,32], index: 5, kind: input, shape index: {}]
  %s6 = inlined_call_operand.vmem [shape: f32[32,32], index: 6, kind: input, shape index: {}]
  %s7 = inlined_call_operand.vmem [shape: f32[4,32], index: 7, kind: input, shape index: {}]
  %s8 = inlined_call_operand.hbm [shape: f32[2,8,32], index: 8, kind: output, shape index: {}]
  %s9 = sld [smem:[#allocation0]]
  $region73: #{tpu_custom_call.1} parent=0
    _
  %s11 = ssub.s32 1, %s9
  %s12 = scalar_select 0, %s11, %s9
  $region1: #{tpu_custom_call.1} parent=0
    #allocation2 [shape = 'u8[8192]{0}', space=vmem, size = 0x2000, scoped, tag = 'input window, operand 0']
    #allocation3 [shape = 's32[2]{0}', space=sflag, size = 0x8, scoped, tag = 'scoped memory for tpu_custom_call.1']
    #allocation4 [shape = 's32[2]{0}', space=sflag, size = 0x8, scoped, tag = 'scoped memory for tpu_custom_call.1']
    #allocation5 [shape = 'u8[8192]{0}', space=vmem, size = 0x2000, scoped, tag = 'input window, operand 1']
    #allocation6 [shape = 's32[2]{0}', space=sflag, size = 0x8, scoped, tag = 'scoped memory for tpu_custom_call.1']
    #allocation7 [shape = 'u8[8192]{0}', space=vmem, size = 0x2000, scoped, tag = 'output window, operand 0']
    %13 = vsyncpa [#allocation3], 0
    %s14 = scalar_lea.sflag [#allocation3], 1
    %15 = vsyncpa %s14, 0
    %16 = vsyncpa [#allocation6], 0
    %s17 = scalar_lea.sflag [#allocation6], 1
    %18 = vsyncpa %s17, 0
    %19 = vsyncpa [#allocation4], 0
    %s20 = scalar_lea.sflag [#allocation4], 1
    %21 = vsyncpa %s20, 0
    loop: start=0, step=1, limit=4
    $region2: #{tpu_custom_call.1} parent=1 // loop_pre_header
      _
    $region3: #{tpu_custom_call.1} parent=1 // loop_header
      %s23 = sphi 0, %s27
      %p24 = scmp.ge.s32.totalorder %s23, 4
      %s33 = sphi 0, %s35
      %s36 = sphi 0, %s33
      %s37 = sphi 0, %s36
      %s53 = sphi 0, %s37
      %s59 = sphi 0, %s61
      %s62 = sphi 0, %s59
      %s63 = sphi 0, %s62
      %s79 = sphi 0, %s63
      %s83 = sphi 0, %s83
      %s85 = sphi 0, %s83
      %s86 = sphi 0, %s85
      %s100 = sphi 0, %s86
      %s104 = sphi 0, %s104
      %s106 = sphi 0, %s104
      %s107 = sphi 0, %s106
      %s121 = sphi 0, %s107
      %s125 = sphi 0, %s125
      %s127 = sphi 0, %s125
      %s128 = sphi 0, %s127
      %s142 = sphi 0, %s128
      %s146 = sphi 0, %s146
      %s148 = sphi 0, %s146
      %s149 = sphi 0, %s148
      %s163 = sphi 0, %s149
      %s167 = sphi 0, %s167
      %s169 = sphi 0, %s167
      %s170 = sphi 0, %s169
      %s184 = sphi 0, %s170
      %s188 = sphi 0, %s188
      %s190 = sphi 0, %s188
      %s191 = sphi 0, %s190
      %s205 = sphi 0, %s191
      %s211 = sphi 0, %s213
      %s214 = sphi 0, %s211
      %s215 = sphi 0, %s214
      %s231 = sphi 0, %s215
    $region4: #{tpu_custom_call.1} parent=1 // loop_header_branch
      %26 = sbr.rel (%p24) target = $region8
    $region5: #{tpu_custom_call.1} parent=1 // loop_body
      %s28 = ssub.s32 %s23, 1
      %s29 = ssub.s32 %s23, 2
      %s30 = sadd.s32 %s23, 1
      %s31 = ssub.s32 %s23, %s30
      %p32 = scmp.eq.s32.totalorder %s31, 0
      %s34 = sadd.s32 %s33, 1
      %s35 = scalar_select %p32, %s33, %s34
      %p38 = pneg %p32
      %p39 = scmp.eq.s32.totalorder %s23, 1
      %p40 = por %p38, %p39
      %p41 = scmp.ne.s32.totalorder %s33, %s36
      %p42 = scmp.eq.s32.totalorder %s23, 0
      %p43 = por %p41, %p42
      %p44 = scmp.ne.s32.totalorder %s33, %s36
      %p45 = scmp.eq.s32.totalorder %s28, 1
      %p46 = por %p44, %p45
      %p47 = scmp.ne.s32.totalorder %s36, %s37
      %p48 = scmp.eq.s32.totalorder %s28, 0
      %p49 = por %p47, %p48
      %p50 = scmp.ne.s32.totalorder %s36, %s37
      %p51 = scmp.eq.s32.totalorder %s29, 1
      %p52 = por %p50, %p51
      %p54 = scmp.ne.s32.totalorder %s37, %s53
      %p55 = scmp.eq.s32.totalorder %s29, 0
      %p56 = por %p54, %p55
      %s57 = ssub.s32 %s23, %s30
      %p58 = scmp.eq.s32.totalorder %s57, 0
      %s60 = sadd.s32 %s59, 1
      %s61 = scalar_select %p58, %s59, %s60
      %p64 = pneg %p58
      %p65 = scmp.eq.s32.totalorder %s23, 1
      %p66 = por %p64, %p65
      %p67 = scmp.ne.s32.totalorder %s59, %s62
      %p68 = scmp.eq.s32.totalorder %s23, 0
      %p69 = por %p67, %p68
      %p70 = scmp.ne.s32.totalorder %s59, %s62
      %p71 = scmp.eq.s32.totalorder %s28, 1
      %p72 = por %p70, %p71
      %p73 = scmp.ne.s32.totalorder %s62, %s63
      %p74 = scmp.eq.s32.totalorder %s28, 0
      %p75 = por %p73, %p74
      %p76 = scmp.ne.s32.totalorder %s62, %s63
      %p77 = scmp.eq.s32.totalorder %s29, 1
      %p78 = por %p76, %p77
      %p80 = scmp.ne.s32.totalorder %s63, %s79
      %p81 = scmp.eq.s32.totalorder %s29, 0
      %p82 = por %p80, %p81
      %s84 = sadd.s32 %s83, 1
      %p87 = scmp.eq.s32.totalorder %s23, 1
      %p88 = scmp.ne.s32.totalorder %s83, %s85
      %p89 = scmp.eq.s32.totalorder %s23, 0
      %p90 = por %p88, %p89
      %p91 = scmp.ne.s32.totalorder %s83, %s85
      %p92 = scmp.eq.s32.totalorder %s28, 1
      %p93 = por %p91, %p92
      %p94 = scmp.ne.s32.totalorder %s85, %s86
      %p95 = scmp.eq.s32.totalorder %s28, 0
      %p96 = por %p94, %p95
      %p97 = scmp.ne.s32.totalorder %s85, %s86
      %p98 = scmp.eq.s32.totalorder %s29, 1
      %p99 = por %p97, %p98
      %p101 = scmp.ne.s32.totalorder %s86, %s100
      %p102 = scmp.eq.s32.totalorder %s29, 0
      %p103 = por %p101, %p102
      %s105 = sadd.s32 %s104, 1
      %p108 = scmp.eq.s32.totalorder %s23, 1
      %p109 = scmp.ne.s32.totalorder %s104, %s106
      %p110 = scmp.eq.s32.totalorder %s23, 0
      %p111 = por %p109, %p110
      %p112 = scmp.ne.s32.totalorder %s104, %s106
      %p113 = scmp.eq.s32.totalorder %s28, 1
      %p114 = por %p112, %p113
      %p115 = scmp.ne.s32.totalorder %s106, %s107
      %p116 = scmp.eq.s32.totalorder %s28, 0
      %p117 = por %p115, %p116
      %p118 = scmp.ne.s32.totalorder %s106, %s107
      %p119 = scmp.eq.s32.totalorder %s29, 1
      %p120 = por %p118, %p119
      %p122 = scmp.ne.s32.totalorder %s107, %s121
      %p123 = scmp.eq.s32.totalorder %s29, 0
      %p124 = por %p122, %p123
      %s126 = sadd.s32 %s125, 1
      %p129 = scmp.eq.s32.totalorder %s23, 1
      %p130 = scmp.ne.s32.totalorder %s125, %s127
      %p131 = scmp.eq.s32.totalorder %s23, 0
      %p132 = por %p130, %p131
      %p133 = scmp.ne.s32.totalorder %s125, %s127
      %p134 = scmp.eq.s32.totalorder %s28, 1
      %p135 = por %p133, %p134
      %p136 = scmp.ne.s32.totalorder %s127, %s128
      %p137 = scmp.eq.s32.totalorder %s28, 0
      %p138 = por %p136, %p137
      %p139 = scmp.ne.s32.totalorder %s127, %s128
      %p140 = scmp.eq.s32.totalorder %s29, 1
      %p141 = por %p139, %p140
      %p143 = scmp.ne.s32.totalorder %s128, %s142
      %p144 = scmp.eq.s32.totalorder %s29, 0
      %p145 = por %p143, %p144
      %s147 = sadd.s32 %s146, 1
      %p150 = scmp.eq.s32.totalorder %s23, 1
      %p151 = scmp.ne.s32.totalorder %s146, %s148
      %p152 = scmp.eq.s32.totalorder %s23, 0
      %p153 = por %p151, %p152
      %p154 = scmp.ne.s32.totalorder %s146, %s148
      %p155 = scmp.eq.s32.totalorder %s28, 1
      %p156 = por %p154, %p155
      %p157 = scmp.ne.s32.totalorder %s148, %s149
      %p158 = scmp.eq.s32.totalorder %s28, 0
      %p159 = por %p157, %p158
      %p160 = scmp.ne.s32.totalorder %s148, %s149
      %p161 = scmp.eq.s32.totalorder %s29, 1
      %p162 = por %p160, %p161
      %p164 = scmp.ne.s32.totalorder %s149, %s163
      %p165 = scmp.eq.s32.totalorder %s29, 0
      %p166 = por %p164, %p165
      %s168 = sadd.s32 %s167, 1
      %p171 = scmp.eq.s32.totalorder %s23, 1
      %p172 = scmp.ne.s32.totalorder %s167, %s169
      %p173 = scmp.eq.s32.totalorder %s23, 0
      %p174 = por %p172, %p173
      %p175 = scmp.ne.s32.totalorder %s167, %s169
      %p176 = scmp.eq.s32.totalorder %s28, 1
      %p177 = por %p175, %p176
      %p178 = scmp.ne.s32.totalorder %s169, %s170
      %p179 = scmp.eq.s32.totalorder %s28, 0
      %p180 = por %p178, %p179
      %p181 = scmp.ne.s32.totalorder %s169, %s170
      %p182 = scmp.eq.s32.totalorder %s29, 1
      %p183 = por %p181, %p182
      %p185 = scmp.ne.s32.totalorder %s170, %s184
      %p186 = scmp.eq.s32.totalorder %s29, 0
      %p187 = por %p185, %p186
      %s189 = sadd.s32 %s188, 1
      %p192 = scmp.eq.s32.totalorder %s23, 1
      %p193 = scmp.ne.s32.totalorder %s188, %s190
      %p194 = scmp.eq.s32.totalorder %s23, 0
      %p195 = por %p193, %p194
      %p196 = scmp.ne.s32.totalorder %s188, %s190
      %p197 = scmp.eq.s32.totalorder %s28, 1
      %p198 = por %p196, %p197
      %p199 = scmp.ne.s32.totalorder %s190, %s191
      %p200 = scmp.eq.s32.totalorder %s28, 0
      %p201 = por %p199, %p200
      %p202 = scmp.ne.s32.totalorder %s190, %s191
      %p203 = scmp.eq.s32.totalorder %s29, 1
      %p204 = por %p202, %p203
      %p206 = scmp.ne.s32.totalorder %s191, %s205
      %p207 = scmp.eq.s32.totalorder %s29, 0
      %p208 = por %p206, %p207
      %s209 = ssub.s32 %s23, %s30
      %p210 = scmp.eq.s32.totalorder %s209, 0
      %s212 = sadd.s32 %s211, 1
      %s213 = scalar_select %p210, %s211, %s212
      %p216 = pneg %p210
      %p217 = scmp.eq.s32.totalorder %s23, 1
      %p218 = por %p216, %p217
      %p219 = scmp.ne.s32.totalorder %s211, %s214
      %p220 = scmp.eq.s32.totalorder %s23, 0
      %p221 = por %p219, %p220
      %p222 = scmp.ne.s32.totalorder %s211, %s214
      %p223 = scmp.eq.s32.totalorder %s28, 1
      %p224 = por %p222, %p223
      %p225 = scmp.ne.s32.totalorder %s214, %s215
      %p226 = scmp.eq.s32.totalorder %s28, 0
      %p227 = por %p225, %p226
      %p228 = scmp.ne.s32.totalorder %s214, %s215
      %p229 = scmp.eq.s32.totalorder %s29, 1
      %p230 = por %p228, %p229
      %p232 = scmp.ne.s32.totalorder %s215, %s231
      %p233 = scmp.eq.s32.totalorder %s29, 0
      %p234 = por %p232, %p233
      %p235 = scmp.le.s32.totalorder 1, %s23
      %p236 = scmp.lt.s32.totalorder %s23, 3
      %p237 = pnand %p235, %p236
      %p238 = pneg %p237
      // Predicated region
      $region9: #{tpu_custom_call.1} parent=5 // pred_check
        _
      $region10: #{tpu_custom_call.1} parent=5 // pred_check_branch
        %240 = sbr.rel (%p237) target = $region12
      $region11: #{tpu_custom_call.1} parent=5 // pred_region
        %s241 = ssub.s32 %s23, 1
        // Predicated region
        $region13: #{tpu_custom_call.1} parent=11 // pred_check
          %p242 = pneg %p96
        $region14: #{tpu_custom_call.1} parent=11 // pred_check_branch
          %244 = sbr.rel (%p242) target = $region16
        $region15: #{tpu_custom_call.1} parent=11 // pred_region
          _
        $region16: #{tpu_custom_call.1} parent=11 // pred_fallthru
          _
        // Predicated region
        $region17: #{tpu_custom_call.1} parent=11 // pred_check
          %p245 = pneg %p117
        $region18: #{tpu_custom_call.1} parent=11 // pred_check_branch
          %247 = sbr.rel (%p245) target = $region20
        $region19: #{tpu_custom_call.1} parent=11 // pred_region
          _
        $region20: #{tpu_custom_call.1} parent=11 // pred_fallthru
          _
        // Predicated region
        $region21: #{tpu_custom_call.1} parent=11 // pred_check
          %p248 = pneg %p138
        $region22: #{tpu_custom_call.1} parent=11 // pred_check_branch
          %250 = sbr.rel (%p248) target = $region24
        $region23: #{tpu_custom_call.1} parent=11 // pred_region
          _
        $region24: #{tpu_custom_call.1} parent=11 // pred_fallthru
          _
        // Predicated region
        $region25: #{tpu_custom_call.1} parent=11 // pred_check
          %p251 = pneg %p159
        $region26: #{tpu_custom_call.1} parent=11 // pred_check_branch
          %253 = sbr.rel (%p251) target = $region28
        $region27: #{tpu_custom_call.1} parent=11 // pred_region
          _
        $region28: #{tpu_custom_call.1} parent=11 // pred_fallthru
          _
        // Predicated region
        $region29: #{tpu_custom_call.1} parent=11 // pred_check
          %p254 = pneg %p180
        $region30: #{tpu_custom_call.1} parent=11 // pred_check_branch
          %256 = sbr.rel (%p254) target = $region32
        $region31: #{tpu_custom_call.1} parent=11 // pred_region
          _
        $region32: #{tpu_custom_call.1} parent=11 // pred_fallthru
          _
        // Predicated region
        $region33: #{tpu_custom_call.1} parent=11 // pred_check
          %p257 = pneg %p201
        $region34: #{tpu_custom_call.1} parent=11 // pred_check_branch
          %259 = sbr.rel (%p257) target = $region36
        $region35: #{tpu_custom_call.1} parent=11 // pred_region
          _
        $region36: #{tpu_custom_call.1} parent=11 // pred_fallthru
          _
      $region12: #{tpu_custom_call.1} parent=5 // pred_fallthru
        _
      %p260 = scmp.lt.s32.totalorder %s23, 2
      // Predicated region
      $region37: #{tpu_custom_call.1} parent=5 // pred_check
        %p261 = pneg %p260
      $region38: #{tpu_custom_call.1} parent=5 // pred_check_branch
        %263 = sbr.rel (%p261) target = $region40
      $region39: #{tpu_custom_call.1} parent=5 // pred_region
        // Predicated region
        $region41: #{tpu_custom_call.1} parent=39 // pred_check
          %p264 = pneg %p43
        $region42: #{tpu_custom_call.1} parent=39 // pred_check_branch
          %266 = sbr.rel (%p264) target = $region44
        $region43: #{tpu_custom_call.1} parent=39 // pred_region
          %s267 = sand.u32 %s33, 1
          %s268 = scalar_lea.sflag [#allocation3], %s267
          %s269 = sand.u32 %s33, 1
          %s270 = smul.addr %s269, 8
          %s271 = scalar_lea.vmem [#allocation2], %s270
          %s273 = ssub.s32 128, 128
          %274 = vsyncadd %s268, %s273
          %s275 = smul.addr %s23, 128
          %s276 = scalar_lea.hbm %s0, %s275
          %s278 = sshll.u32 %s271, 4
          %s279 = int_to_ptr.vmem [resolvable:$true] %s278
          %281 = dma.hbm_to_vmem [thread:$0]  %s276, 128, %s279, %s268
        $region44: #{tpu_custom_call.1} parent=39 // pred_fallthru
          _
        // Predicated region
        $region45: #{tpu_custom_call.1} parent=39 // pred_check
          %p282 = pneg %p69
        $region46: #{tpu_custom_call.1} parent=39 // pred_check_branch
          %284 = sbr.rel (%p282) target = $region48
        $region47: #{tpu_custom_call.1} parent=39 // pred_region
          %s285 = sand.u32 %s59, 1
          %s286 = scalar_lea.sflag [#allocation6], %s285
          %s287 = sand.u32 %s59, 1
          %s288 = smul.addr %s287, 8
          %s289 = scalar_lea.vmem [#allocation5], %s288
          %s291 = ssub.s32 128, 128
          %292 = vsyncadd %s286, %s291
          %s293 = smul.addr %s23, 128
          %s294 = scalar_lea.hbm %s1, %s293
          %s296 = sshll.u32 %s289, 4
          %s297 = int_to_ptr.vmem [resolvable:$true] %s296
          %299 = dma.hbm_to_vmem [thread:$0]  %s294, 128, %s297, %s286
        $region48: #{tpu_custom_call.1} parent=39 // pred_fallthru
          _
      $region40: #{tpu_custom_call.1} parent=5 // pred_fallthru
        _
      %p300 = scmp.le.s32.totalorder 1, %s23
      %p301 = scmp.lt.s32.totalorder %s23, 3
      %p302 = pnand %p300, %p301
      %p303 = pneg %p302
      // Predicated region
      $region49: #{tpu_custom_call.1} parent=5 // pred_check
        _
      $region50: #{tpu_custom_call.1} parent=5 // pred_check_branch
        %305 = sbr.rel (%p302) target = $region52
      $region51: #{tpu_custom_call.1} parent=5 // pred_region
        %s306 = ssub.s32 %s23, 1
        %s307 = sand.u32 %s36, 1
        %s308 = scalar_lea.sflag [#allocation3], %s307
        %s309 = sand.u32 %s36, 1
        %s310 = smul.addr %s309, 8
        %s311 = scalar_lea.vmem [#allocation2], %s310
        // Predicated region
        $region53: #{tpu_custom_call.1} parent=51 // pred_check
          %p312 = pneg %p49
        $region54: #{tpu_custom_call.1} parent=51 // pred_check_branch
          %314 = sbr.rel (%p312) target = $region56
        $region55: #{tpu_custom_call.1} parent=51 // pred_region
          %315 = dma.done %s308, 128
        $region56: #{tpu_custom_call.1} parent=51 // pred_fallthru
          _
        %s316 = sand.u32 %s62, 1
        %s317 = scalar_lea.sflag [#allocation6], %s316
        %s318 = sand.u32 %s62, 1
        %s319 = smul.addr %s318, 8
        %s320 = scalar_lea.vmem [#allocation5], %s319
        // Predicated region
        $region57: #{tpu_custom_call.1} parent=51 // pred_check
          %p321 = pneg %p75
        $region58: #{tpu_custom_call.1} parent=51 // pred_check_branch
          %323 = sbr.rel (%p321) target = $region60
        $region59: #{tpu_custom_call.1} parent=51 // pred_region
          %324 = dma.done %s317, 128
        $region60: #{tpu_custom_call.1} parent=51 // pred_fallthru
          _
        %s325 = sand.u32 %s36, 1
        %s326 = scalar_lea.sflag [#allocation3], %s325
        %s327 = sand.u32 %s36, 1
        %s328 = smul.addr %s327, 8
        %s329 = scalar_lea.vmem [#allocation2], %s328
        %p330 = pneg %p49
        %p331 = pneg %p46
        %s332 = sand.u32 %s62, 1
        %s333 = scalar_lea.sflag [#allocation6], %s332
        %s334 = sand.u32 %s62, 1
        %s335 = smul.addr %s334, 8
        %s336 = scalar_lea.vmem [#allocation5], %s335
        %p337 = pneg %p75
        %p338 = pneg %p72
        %p339 = pneg %p96
        %p340 = pneg %p93
        %p341 = pneg %p117
        %p342 = pneg %p114
        %p343 = pneg %p138
        %p344 = pneg %p135
        %p345 = pneg %p159
        %p346 = pneg %p156
        %p347 = pneg %p180
        %p348 = pneg %p177
        %p349 = pneg %p201
        %p350 = pneg %p198
        %p351 = pneg %p227
        %p352 = pneg %p224
        %s353 = sand.u32 %s214, 1
        %s354 = scalar_lea.sflag [#allocation4], %s353
        %s355 = sand.u32 %s214, 1
        %s356 = smul.addr %s355, 8
        %s357 = scalar_lea.vmem [#allocation7], %s356
        %v358 = vld [vmem:[%s311] sm:$0xff]
        %v359 = vld [vmem:[%s320] sm:$0xff]
        %v360 = vld [vmem:[%s2] sm:$0xff]
        %v361 = vld [vmem:[%s2 + $0x8] sm:$0xff]
        %v362 = vld [vmem:[%s2 + $0x10] sm:$0xff]
        %v363 = vld [vmem:[%s2 + $0x18] sm:$0xff]
        %v364 = vld [vmem:[%s7] sm:$0x1]
        %v365 = vlaneseq
        %v366 = vshrl.u32 %v365, 7
        %v367 = vsub.s32 0, %v366
        %v368 = vrot.slane %v364, %v367
        %vm369 = vcmask 261120
        %v371 = vsel %vm369, %v358, 0
        %373 = vmatprep.subr.mxu0 0.0
        %374 = vmatpush1.msra.mxu0 %v360
        %375 = vmatprep.subr.mxu0 0.0
        %376 = vmatpush1.msra.mxu0 %v361
        %377 = vmatprep.subr.mxu0 0.0
        %378 = vmatpush1.msra.mxu0 %v362
        %379 = vmatprep.subr.mxu0 0.0
        %380 = vmatpush1.msra.mxu0 %v363
        %381 = vmatprep.subr.mxu0 0.0
        %382 = vmatpush1.msra.mxu0 0.0
        %383 = vmatprep.subr.mxu0 0.0
        %384 = vmatpush1.msra.mxu0 0.0
        %385 = vmatprep.subr.mxu0 0.0
        %386 = vmatpush1.msra.mxu0 0.0
        %387 = vmatprep.subr.mxu0 0.0
        %388 = vmatpush1.msra.mxu0 0.0
        %389 = vmatprep.subr.mxu0 0.0
        %390 = vmatpush1.msra.mxu0 0.0
        %391 = vmatprep.subr.mxu0 0.0
        %392 = vmatpush1.msra.mxu0 0.0
        %393 = vmatprep.subr.mxu0 0.0
        %394 = vmatpush1.msra.mxu0 0.0
        %395 = vmatprep.subr.mxu0 0.0
        %396 = vmatpush1.msra.mxu0 0.0
        %397 = vmatprep.subr.mxu0 0.0
        %398 = vmatpush1.msra.mxu0 0.0
        %399 = vmatprep.subr.mxu0 0.0
        %400 = vmatpush1.msra.mxu0 0.0
        %401 = vmatprep.subr.mxu0 0.0
        %402 = vmatpush1.msra.mxu0 0.0
        %403 = vmatprep.subr.mxu0 0.0
        %404 = vmatpush1.msra.mxu0 0.0
        %405 = vmatprep.subr.mxu0 0.0
        %406 = vmatpush1.msra.mxu0 0.0
        %407 = vmatprep.subr.mxu0 0.0
        %408 = vmatpush1.msra.mxu0 0.0
        %409 = vmatprep.subr.mxu0 0.0
        %410 = vmatpush1.msra.mxu0 0.0
        %411 = vmatprep.subr.mxu0 0.0
        %412 = vmatpush1.msra.mxu0 0.0
        %413 = vmatprep.subr.mxu0 0.0
        %414 = vmatpush1.msra.mxu0 0.0
        %415 = vmatprep.subr.mxu0 0.0
        %416 = vmatpush1.msra.mxu0 0.0
        %417 = vmatprep.subr.mxu0 0.0
        %418 = vmatpush1.msra.mxu0 0.0
        %419 = vmatprep.subr.mxu0 0.0
        %420 = vmatpush1.msra.mxu0 0.0
        %421 = vmatprep.subr.mxu0 0.0
        %422 = vmatpush1.msra.mxu0 0.0
        %423 = vmatprep.subr.mxu0 0.0
        %424 = vmatpush1.msra.mxu0 0.0
        %425 = vmatprep.subr.mxu0 0.0
        %426 = vmatpush1.msra.mxu0 0.0
        %427 = vmatprep.subr.mxu0 0.0
        %428 = vmatpush1.msra.mxu0 0.0
        %429 = vmatprep.subr.mxu0 0.0
        %430 = vmatpush1.msra.mxu0 0.0
        %431 = vmatprep.subr.mxu0 0.0
        %432 = vmatpush1.msra.mxu0 0.0
        %433 = vmatprep.subr.mxu0 0.0
        %434 = vmatpush1.msra.mxu0 0.0
        %435 = vmatprep.subr.mxu0 0.0
        %436 = vmatpush1.msra.mxu0 0.0
        %437 = vmatprep.mubr.f32.mxu0 0.0
        %438 = vmatmul.mubr.f32.gmra.mrb[0].mxu0 %v371
        %v439 = vpop.f32.mrb[0].mxu0
        %v440 = vadd.f32 %v368, %v439
        %v441 = vpop.f32.mrb[0].mxu0
        %442 = vdwg.mxu0
        %v443 = vld [vmem:[%s3] sm:$0xff]
        %v444 = vld [vmem:[%s3 + $0x8] sm:$0xff]
        %v445 = vld [vmem:[%s3 + $0x10] sm:$0xff]
        %v446 = vld [vmem:[%s3 + $0x18] sm:$0xff]
        %v447 = vld [vmem:[%s3 + $0x20] sm:$0xff]
        %v448 = vld [vmem:[%s3 + $0x28] sm:$0xff]
        %v449 = vld [vmem:[%s3 + $0x30] sm:$0xff]
        %v450 = vld [vmem:[%s3 + $0x38] sm:$0xff]
        %v451 = vld [vmem:[%s7 + $0x1] sm:$0x1]
        %v452 = vlaneseq
        %v453 = vshrl.u32 %v452, 7
        %v454 = vsub.s32 0, %v453
        %v455 = vrot.slane %v451, %v454
        %vm456 = vcmask 523264
        %v458 = vsel %vm456, %v359, 0
        %460 = vmatprep.subr.mxu0 0.0
        %461 = vmatpush1.msra.mxu0 %v443
        %462 = vmatprep.subr.mxu0 0.0
        %463 = vmatpush1.msra.mxu0 %v444
        %464 = vmatprep.subr.mxu0 0.0
        %465 = vmatpush1.msra.mxu0 %v445
        %466 = vmatprep.subr.mxu0 0.0
        %467 = vmatpush1.msra.mxu0 %v446
        %468 = vmatprep.subr.mxu0 0.0
        %469 = vmatpush1.msra.mxu0 %v447
        %470 = vmatprep.subr.mxu0 0.0
        %471 = vmatpush1.msra.mxu0 %v448
        %472 = vmatprep.subr.mxu0 0.0
        %473 = vmatpush1.msra.mxu0 %v449
        %474 = vmatprep.subr.mxu0 0.0
        %475 = vmatpush1.msra.mxu0 %v450
        %476 = vmatprep.subr.mxu0 0.0
        %477 = vmatpush1.msra.mxu0 0.0
        %478 = vmatprep.subr.mxu0 0.0
        %479 = vmatpush1.msra.mxu0 0.0
        %480 = vmatprep.subr.mxu0 0.0
        %481 = vmatpush1.msra.mxu0 0.0
        %482 = vmatprep.subr.mxu0 0.0
        %483 = vmatpush1.msra.mxu0 0.0
        %484 = vmatprep.subr.mxu0 0.0
        %485 = vmatpush1.msra.mxu0 0.0
        %486 = vmatprep.subr.mxu0 0.0
        %487 = vmatpush1.msra.mxu0 0.0
        %488 = vmatprep.subr.mxu0 0.0
        %489 = vmatpush1.msra.mxu0 0.0
        %490 = vmatprep.subr.mxu0 0.0
        %491 = vmatpush1.msra.mxu0 0.0
        %492 = vmatprep.subr.mxu0 0.0
        %493 = vmatpush1.msra.mxu0 0.0
        %494 = vmatprep.subr.mxu0 0.0
        %495 = vmatpush1.msra.mxu0 0.0
        %496 = vmatprep.subr.mxu0 0.0
        %497 = vmatpush1.msra.mxu0 0.0
        %498 = vmatprep.subr.mxu0 0.0
        %499 = vmatpush1.msra.mxu0 0.0
        %500 = vmatprep.subr.mxu0 0.0
        %501 = vmatpush1.msra.mxu0 0.0
        %502 = vmatprep.subr.mxu0 0.0
        %503 = vmatpush1.msra.mxu0 0.0
        %504 = vmatprep.subr.mxu0 0.0
        %505 = vmatpush1.msra.mxu0 0.0
        %506 = vmatprep.subr.mxu0 0.0
        %507 = vmatpush1.msra.mxu0 0.0
        %508 = vmatprep.subr.mxu0 0.0
        %509 = vmatpush1.msra.mxu0 0.0
        %510 = vmatprep.subr.mxu0 0.0
        %511 = vmatpush1.msra.mxu0 0.0
        %512 = vmatprep.subr.mxu0 0.0
        %513 = vmatpush1.msra.mxu0 0.0
        %514 = vmatprep.subr.mxu0 0.0
        %515 = vmatpush1.msra.mxu0 0.0
        %516 = vmatprep.subr.mxu0 0.0
        %517 = vmatpush1.msra.mxu0 0.0
        %518 = vmatprep.subr.mxu0 0.0
        %519 = vmatpush1.msra.mxu0 0.0
        %520 = vmatprep.subr.mxu0 0.0
        %521 = vmatpush1.msra.mxu0 0.0
        %522 = vmatprep.subr.mxu0 0.0
        %523 = vmatpush1.msra.mxu0 0.0
        %524 = vmatprep.mubr.f32.mxu0 0.0
        %525 = vmatmul.mubr.f32.gmra.mrb[0].mxu0 %v458
        %v526 = vpop.f32.mrb[0].mxu0
        %v527 = vadd.f32 %v455, %v526
        %v528 = vpop.f32.mrb[0].mxu0
        %529 = vdwg.mxu0
        %v530 = vmul.f32 %v440, %v440
        %v531 = vsel %vm369, %v530, 0.0
        %532 = vadd.xlane.f32.xlu0 %v531
        %v533 = vpop.xlane.xlu0 %532
        %v534 = vmax.f32 %v533, 1e-24
        %v535 = vrsqrt.pop %v534
        %v536 = vmul.f32 %v440, %v535
        %v537 = vmul.f32 %v527, %v527
        %v538 = vsel %vm369, %v537, 0.0
        %539 = vadd.xlane.f32.xlu0 %v538
        %v540 = vpop.xlane.xlu0 %539
        %v541 = vmax.f32 %v540, 1e-24
        %v542 = vrsqrt.pop %v541
        %v543 = vmul.f32 %v527, %v542
        %v544 = vld [vmem:[%s4] sm:$0x1]
        %v546 = vlaneseq
        %v547 = vshrl.u32 %v546, 7
        %v548 = vsub.s32 0, %v547
        %v549 = vrot.slane %v544, %v548
        %v551 = vmul.f32 %v536, %v549
        %v552 = vsel %vm369, %v551, 0.0
        %553 = vadd.xlane.f32.xlu0 %v552
        %v554 = vpop.xlane.xlu0 %553
        %v555 = vmul.f32 %v554, 0.17677669
        %v556 = vmul.f32 %v555, %v555
        %v557 = vrot.slane %v556, 4
        %v558 = vadd.f32 %v556, %v557
        %v559 = vrot.slane %v558, 2
        %v560 = vadd.f32 %v558, %v559
        %v561 = vrot.slane %v560, 1
        %v562 = vadd.f32 %v560, %v561
        %v563 = vmax.f32 %v562, 1e-24
        %v564 = vrsqrt.pop %v563
        %v565 = vmul.f32 %v555, %v564
        %v566 = vmul.f32 %v565, %v536
        %v567 = vsel %vm369, %v566, 0.0
        %v568 = vrot.slane %v567, 4
        %v569 = vadd.f32 %v567, %v568
        %v570 = vrot.slane %v569, 2
        %v571 = vadd.f32 %v569, %v570
        %v572 = vrot.slane %v571, 1
        %v573 = vadd.f32 %v571, %v572
        %v574 = vmul.f32 %v573, %v543
        %v575 = vld [vmem:[%s5] sm:$0xff]
        %v576 = vld [vmem:[%s5 + $0x8] sm:$0xff]
        %v577 = vld [vmem:[%s5 + $0x10] sm:$0xff]
        %v578 = vld [vmem:[%s5 + $0x18] sm:$0xff]
        %v579 = vld [vmem:[%s7 + $0x2] sm:$0x1]
        %v580 = vlaneseq
        %v581 = vshrl.u32 %v580, 7
        %v582 = vsub.s32 0, %v581
        %v583 = vrot.slane %v579, %v582
        %v585 = vsel %vm369, %v574, 0
        %587 = vmatprep.subr.mxu0 0.0
        %588 = vmatpush1.msra.mxu0 %v575
        %589 = vmatprep.subr.mxu0 0.0
        %590 = vmatpush1.msra.mxu0 %v576
        %591 = vmatprep.subr.mxu0 0.0
        %592 = vmatpush1.msra.mxu0 %v577
        %593 = vmatprep.subr.mxu0 0.0
        %594 = vmatpush1.msra.mxu0 %v578
        %595 = vmatprep.subr.mxu0 0.0
        %596 = vmatpush1.msra.mxu0 0.0
        %597 = vmatprep.subr.mxu0 0.0
        %598 = vmatpush1.msra.mxu0 0.0
        %599 = vmatprep.subr.mxu0 0.0
        %600 = vmatpush1.msra.mxu0 0.0
        %601 = vmatprep.subr.mxu0 0.0
        %602 = vmatpush1.msra.mxu0 0.0
        %603 = vmatprep.subr.mxu0 0.0
        %604 = vmatpush1.msra.mxu0 0.0
        %605 = vmatprep.subr.mxu0 0.0
        %606 = vmatpush1.msra.mxu0 0.0
        %607 = vmatprep.subr.mxu0 0.0
        %608 = vmatpush1.msra.mxu0 0.0
        %609 = vmatprep.subr.mxu0 0.0
        %610 = vmatpush1.msra.mxu0 0.0
        %611 = vmatprep.subr.mxu0 0.0
        %612 = vmatpush1.msra.mxu0 0.0
        %613 = vmatprep.subr.mxu0 0.0
        %614 = vmatpush1.msra.mxu0 0.0
        %615 = vmatprep.subr.mxu0 0.0
        %616 = vmatpush1.msra.mxu0 0.0
        %617 = vmatprep.subr.mxu0 0.0
        %618 = vmatpush1.msra.mxu0 0.0
        %619 = vmatprep.subr.mxu0 0.0
        %620 = vmatpush1.msra.mxu0 0.0
        %621 = vmatprep.subr.mxu0 0.0
        %622 = vmatpush1.msra.mxu0 0.0
        %623 = vmatprep.subr.mxu0 0.0
        %624 = vmatpush1.msra.mxu0 0.0
        %625 = vmatprep.subr.mxu0 0.0
        %626 = vmatpush1.msra.mxu0 0.0
        %627 = vmatprep.subr.mxu0 0.0
        %628 = vmatpush1.msra.mxu0 0.0
        %629 = vmatprep.subr.mxu0 0.0
        %630 = vmatpush1.msra.mxu0 0.0
        %631 = vmatprep.subr.mxu0 0.0
        %632 = vmatpush1.msra.mxu0 0.0
        %633 = vmatprep.subr.mxu0 0.0
        %634 = vmatpush1.msra.mxu0 0.0
        %635 = vmatprep.subr.mxu0 0.0
        %636 = vmatpush1.msra.mxu0 0.0
        %637 = vmatprep.subr.mxu0 0.0
        %638 = vmatpush1.msra.mxu0 0.0
        %639 = vmatprep.subr.mxu0 0.0
        %640 = vmatpush1.msra.mxu0 0.0
        %641 = vmatprep.subr.mxu0 0.0
        %642 = vmatpush1.msra.mxu0 0.0
        %643 = vmatprep.subr.mxu0 0.0
        %644 = vmatpush1.msra.mxu0 0.0
        %645 = vmatprep.subr.mxu0 0.0
        %646 = vmatpush1.msra.mxu0 0.0
        %647 = vmatprep.subr.mxu0 0.0
        %648 = vmatpush1.msra.mxu0 0.0
        %649 = vmatprep.subr.mxu0 0.0
        %650 = vmatpush1.msra.mxu0 0.0
        %651 = vmatprep.mubr.f32.mxu0 0.0
        %652 = vmatmul.mubr.f32.gmra.mrb[0].mxu0 %v585
        %v653 = vpop.f32.mrb[0].mxu0
        %v654 = vadd.f32 %v583, %v653
        %v655 = vpop.f32.mrb[0].mxu0
        %656 = vdwg.mxu0
        %v657 = vadd.f32 %v654, %v536
        %v658 = vld [vmem:[%s6] sm:$0xff]
        %v659 = vld [vmem:[%s6 + $0x8] sm:$0xff]
        %v660 = vld [vmem:[%s6 + $0x10] sm:$0xff]
        %v661 = vld [vmem:[%s6 + $0x18] sm:$0xff]
        %v662 = vld [vmem:[%s7 + $0x3] sm:$0x1]
        %v663 = vlaneseq
        %v664 = vshrl.u32 %v663, 7
        %v665 = vsub.s32 0, %v664
        %v666 = vrot.slane %v662, %v665
        %v668 = vsel %vm369, %v657, 0
        %670 = vmatprep.subr.mxu0 0.0
        %671 = vmatpush1.msra.mxu0 %v658
        %672 = vmatprep.subr.mxu0 0.0
        %673 = vmatpush1.msra.mxu0 %v659
        %674 = vmatprep.subr.mxu0 0.0
        %675 = vmatpush1.msra.mxu0 %v660
        %676 = vmatprep.subr.mxu0 0.0
        %677 = vmatpush1.msra.mxu0 %v661
        %678 = vmatprep.subr.mxu0 0.0
        %679 = vmatpush1.msra.mxu0 0.0
        %680 = vmatprep.subr.mxu0 0.0
        %681 = vmatpush1.msra.mxu0 0.0
        %682 = vmatprep.subr.mxu0 0.0
        %683 = vmatpush1.msra.mxu0 0.0
        %684 = vmatprep.subr.mxu0 0.0
        %685 = vmatpush1.msra.mxu0 0.0
        %686 = vmatprep.subr.mxu0 0.0
        %687 = vmatpush1.msra.mxu0 0.0
        %688 = vmatprep.subr.mxu0 0.0
        %689 = vmatpush1.msra.mxu0 0.0
        %690 = vmatprep.subr.mxu0 0.0
        %691 = vmatpush1.msra.mxu0 0.0
        %692 = vmatprep.subr.mxu0 0.0
        %693 = vmatpush1.msra.mxu0 0.0
        %694 = vmatprep.subr.mxu0 0.0
        %695 = vmatpush1.msra.mxu0 0.0
        %696 = vmatprep.subr.mxu0 0.0
        %697 = vmatpush1.msra.mxu0 0.0
        %698 = vmatprep.subr.mxu0 0.0
        %699 = vmatpush1.msra.mxu0 0.0
        %700 = vmatprep.subr.mxu0 0.0
        %701 = vmatpush1.msra.mxu0 0.0
        %702 = vmatprep.subr.mxu0 0.0
        %703 = vmatpush1.msra.mxu0 0.0
        %704 = vmatprep.subr.mxu0 0.0
        %705 = vmatpush1.msra.mxu0 0.0
        %706 = vmatprep.subr.mxu0 0.0
        %707 = vmatpush1.msra.mxu0 0.0
        %708 = vmatprep.subr.mxu0 0.0
        %709 = vmatpush1.msra.mxu0 0.0
        %710 = vmatprep.subr.mxu0 0.0
        %711 = vmatpush1.msra.mxu0 0.0
        %712 = vmatprep.subr.mxu0 0.0
        %713 = vmatpush1.msra.mxu0 0.0
        %714 = vmatprep.subr.mxu0 0.0
        %715 = vmatpush1.msra.mxu0 0.0
        %716 = vmatprep.subr.mxu0 0.0
        %717 = vmatpush1.msra.mxu0 0.0
        %718 = vmatprep.subr.mxu0 0.0
        %719 = vmatpush1.msra.mxu0 0.0
        %720 = vmatprep.subr.mxu0 0.0
        %721 = vmatpush1.msra.mxu0 0.0
        %722 = vmatprep.subr.mxu0 0.0
        %723 = vmatpush1.msra.mxu0 0.0
        %724 = vmatprep.subr.mxu0 0.0
        %725 = vmatpush1.msra.mxu0 0.0
        %726 = vmatprep.subr.mxu0 0.0
        %727 = vmatpush1.msra.mxu0 0.0
        %728 = vmatprep.subr.mxu0 0.0
        %729 = vmatpush1.msra.mxu0 0.0
        %730 = vmatprep.subr.mxu0 0.0
        %731 = vmatpush1.msra.mxu0 0.0
        %732 = vmatprep.subr.mxu0 0.0
        %733 = vmatpush1.msra.mxu0 0.0
        %734 = vmatprep.mubr.f32.mxu0 0.0
        %735 = vmatmul.mubr.f32.gmra.mrb[0].mxu0 %v668
        %v736 = vpop.f32.mrb[0].mxu0
        %v737 = vadd.f32 %v666, %v736
        %v738 = vpop.f32.mrb[0].mxu0
        %739 = vdwg.mxu0
        %740 = vst.msk [vmem:[%s357] sm:$0xff] %vm369, %v737
        %s741 = sand.u32 %s214, 1
        %s742 = scalar_lea.sflag [#allocation4], %s741
        %s743 = sand.u32 %s214, 1
        %s744 = smul.addr %s743, 8
        %s745 = scalar_lea.vmem [#allocation7], %s744
        // Predicated region
        $region61: #{tpu_custom_call.1} parent=51 // pred_check
          %p746 = pneg %p224
        $region62: #{tpu_custom_call.1} parent=51 // pred_check_branch
          %748 = sbr.rel (%p746) target = $region64
        $region63: #{tpu_custom_call.1} parent=51 // pred_region
          %s750 = ssub.s32 128, 128
          %751 = vsyncadd %s742, %s750
          %s752 = smul.addr %s28, 128
          %s753 = scalar_lea.hbm %s8, %s752
          %s755 = sshll.u32 %s745, 4
          %s756 = int_to_ptr.vmem [resolvable:$true] %s755
          %758 = dma.vmem_to_hbm [thread:$0]  %s756, 128, %s753, %s742
        $region64: #{tpu_custom_call.1} parent=51 // pred_fallthru
          _
      $region52: #{tpu_custom_call.1} parent=5 // pred_fallthru
        _
      %p759 = scmp.le.s32.totalorder 2, %s23
      // Predicated region
      $region65: #{tpu_custom_call.1} parent=5 // pred_check
        %p760 = pneg %p759
      $region66: #{tpu_custom_call.1} parent=5 // pred_check_branch
        %762 = sbr.rel (%p760) target = $region68
      $region67: #{tpu_custom_call.1} parent=5 // pred_region
        %s763 = ssub.s32 %s23, 2
        // Predicated region
        $region69: #{tpu_custom_call.1} parent=67 // pred_check
          %p764 = pneg %p230
        $region70: #{tpu_custom_call.1} parent=67 // pred_check_branch
          %766 = sbr.rel (%p764) target = $region72
        $region71: #{tpu_custom_call.1} parent=67 // pred_region
          %s767 = sand.u32 %s215, 1
          %s768 = scalar_lea.sflag [#allocation4], %s767
          %s769 = sand.u32 %s215, 1
          %s770 = smul.addr %s769, 8
          %s771 = scalar_lea.vmem [#allocation7], %s770
          %772 = dma.done %s768, 128
        $region72: #{tpu_custom_call.1} parent=67 // pred_fallthru
          _
      $region68: #{tpu_custom_call.1} parent=5 // pred_fallthru
        _
    $region6: #{tpu_custom_call.1} parent=1 // loop_footer
      %s27 = sadd.s32 1, %s23
    $region7: #{tpu_custom_call.1} parent=1 // loop_footer_branch
      %22 = sbr.rel target = $region3
    $region8: #{tpu_custom_call.1} parent=1 // loop_exit
      _
    %773 = vsyncpa [#allocation3], 1
    %s774 = scalar_lea.sflag [#allocation3], 1
    %775 = vsyncpa %s774, 1
    %776 = vsyncpa [#allocation6], 1
    %s777 = scalar_lea.sflag [#allocation6], 1
    %778 = vsyncpa %s777, 1
    %779 = vsyncpa [#allocation4], 1
    %s780 = scalar_lea.sflag [#allocation4], 1
    %781 = vsyncpa %s780, 1

</llo_original>
